<compile_context>
chip_gen: v7x
topology: tpu7x:2x2x1
jax: 0.10.0
libtpu: 0.0.40
codegen_flags: <defaults>
</compile_context>

<pallas_src>
import jax
import jax.numpy as jnp
from jax.experimental import pallas as pl
from jax.experimental.pallas import tpu as pltpu


def _masked_loss_kernel(inp_ref, tgt_ref, acc_ref):
    t = pl.program_id(2)

    @pl.when(t == 0)
    def _():
        acc_ref[...] = jnp.zeros_like(acc_ref)

    # Upcast (bf16 -> f32) once per tile; all arithmetic/accumulation is f32.
    inp = inp_ref[...].astype(jnp.float32)                 # (1, C, TR, LANE)
    tgt = tgt_ref[...].astype(jnp.float32)                 # (1, C, TR, LANE)

    # Whitespace pixels: channel mean exactly 1.0 -> contribute 0.
    chan_mean = jnp.mean(tgt, axis=1, keepdims=True)       # (1, 1, TR, LANE)
    keep = jnp.where(chan_mean == jnp.float32(1.0),
                     jnp.float32(0.0), jnp.float32(1.0))

    # Sum squared error over C first, then apply the 0/1 mask per pixel.
    diff = inp - tgt
    pix_sse = jnp.sum(diff * diff, axis=1, keepdims=True)  # (1, 1, TR, LANE)

    # Elementwise (vreg-shaped) accumulation into the resident output block.
    acc_ref[...] += pix_sse * keep


def _vmem_capacity_bytes():
    try:
        return int(pltpu.get_tpu_info().vmem_capacity_bytes)
    except Exception:
        return 64 << 20  # conservative (v7x per-core VMEM)


def _choose_tile_rows(rows, bytes_per_row, target_bytes, sublane, floor_rows):
    """Largest divisor of `rows` that is a multiple of `sublane` (or == rows)
    whose per-input tile fits `target_bytes`, then raised to a floor so each
    per-channel DMA segment stays descriptor-light."""
    candidates = sorted(d for d in range(1, rows + 1)
                        if rows % d == 0 and (d % sublane == 0 or d == rows))
    fitting = [d for d in candidates if d * bytes_per_row <= target_bytes]
    tr = max(fitting) if fitting else candidates[0]
    floor = min(floor_rows, rows)
    if tr < floor:
        tr = min(d for d in candidates if d >= floor)
    return tr


def masked_loss_pallas(inp, tgt, epoch, *, mask_multiplier, max_epochs,
                       compute_dtype=jnp.bfloat16,
                       tile_target_bytes=None,
                       min_segment_bytes=16 * 1024):
    """Scalar loss = mean(mse(input, target, 'none') * mask)."""
    B, C, H, W = inp.shape
    total = B * C * H * W
    HW = H * W
    lane = 128

    elem_bytes = jnp.dtype(compute_dtype).itemsize
    sublane = {4: 8, 2: 16, 1: 32}.get(elem_bytes, 8)

    inp_c = inp.astype(compute_dtype).reshape(B, C, HW)
    tgt_c = tgt.astype(compute_dtype).reshape(B, C, HW)

    # Pad HW up to a lane multiple with 1.0: padded pixels have target == 1.0
    # (mask 0) and input == target (diff 0), so they contribute nothing; the
    # final mean still divides by the unpadded `total`.
    pad = (-HW) % lane
    if pad:
        ones = jnp.ones((B, C, pad), dtype=compute_dtype)
        inp_c = jnp.concatenate([inp_c, ones], axis=-1)
        tgt_c = jnp.concatenate([tgt_c, ones], axis=-1)
    rows = (HW + pad) // lane

    inp4 = inp_c.reshape(B, C, rows, lane)
    tgt4 = tgt_c.reshape(B, C, rows, lane)

    vmem_cap = _vmem_capacity_bytes()
    if tile_target_bytes is None:
        # ~4 MiB per input tile by default; footprint stays well inside v7x's
        # 64 MiB per-core VMEM and comfortably inside v5e/v6e's 128 MiB.
        tile_target_bytes = max(1 << 20, min(4 << 20, vmem_cap // 16))

    floor_rows = max(1, min_segment_bytes // (lane * elem_bytes))
    tr = _choose_tile_rows(rows, C * lane * elem_bytes, tile_target_bytes,
                           sublane, floor_rows)
    nt = rows // tr
    # Feed both v7x TensorCores even at B == 1: split the pixel-tile range in
    # two along an extra "parallel" axis with per-half accumulator slots.
    ns = 2 if nt % 2 == 0 else 1
    nt2 = nt // ns

    # Actual VMEM footprint: double-buffered input+target tiles plus the
    # revisited output block (with margin), passed explicitly so the tile
    # budget is safe across chip generations' default scoped limits.
    tile_bytes = C * tr * lane * elem_bytes
    out_block_bytes = tr * lane * 4
    vmem_limit = int(min(vmem_cap, 4 * tile_bytes + 2 * out_block_bytes + (4 << 20)))

    cost = pl.CostEstimate(
        flops=5 * total,
        transcendentals=0,
        bytes_accessed=2 * B * C * rows * lane * elem_bytes
                       + B * ns * tr * lane * 4,
    )

    partials = pl.pallas_call(
        _masked_loss_kernel,
        out_shape=jax.ShapeDtypeStruct((B, ns, tr, lane), jnp.float32),
        grid_spec=pltpu.PrefetchScalarGridSpec(
            num_scalar_prefetch=0,
            grid=(B, ns, nt2),
            in_specs=[
                pl.BlockSpec((1, C, tr, lane),
                             lambda b, s, t: (b, 0, s * nt2 + t, 0)),  # input
                pl.BlockSpec((1, C, tr, lane),
                             lambda b, s, t: (b, 0, s * nt2 + t, 0)),  # target
            ],
            out_specs=pl.BlockSpec((1, 1, tr, lane),
                                   lambda b, s, t: (b, s, 0, 0)),
        ),
        compiler_params=pltpu.CompilerParams(
            dimension_semantics=("parallel", "parallel", "arbitrary"),
            vmem_limit_bytes=vmem_limit),
        cost_estimate=cost,
    )(inp4, tgt4)

    # Tiny final reduction; scalar weight + mean normalization applied once here.
    masked_weight = jnp.float32(-9.0 * epoch / max_epochs + mask_multiplier)
    return jnp.sum(partials) * masked_weight / jnp.float32(total)


def masked_loss_ref(inp, tgt, epoch, *, mask_multiplier, max_epochs):
    mask = jnp.mean(tgt, axis=1)                                   # (B, H, W)
    masked_weight = -9.0 * epoch / max_epochs + mask_multiplier
    mask = jnp.where(mask == 1.0, 0.0, masked_weight)
    mask = mask[:, None, :, :]                                     # (B, 1, H, W)
    return jnp.mean((inp - tgt) ** 2 * mask)


if __name__ == "__main__":
    mask_multiplier = 10.0
    max_epochs = 100
    epoch = 7

    def run_case(case_key, shape, **kwargs):
        compute_dtype = kwargs.get("compute_dtype", jnp.bfloat16)
        k1, k2, k3 = jax.random.split(case_key, 3)
        B, C, H, W = shape
        inp = jax.random.normal(k1, shape, dtype=jnp.float32)
        tgt = jax.random.normal(k2, shape, dtype=jnp.float32)
        # Force some "whitespace" pixels (all channels == 1) so the eq-branch is hit.
        white = jax.random.bernoulli(k3, 0.25, (B, 1, H, W))
        tgt = jnp.where(white, jnp.float32(1.0), tgt)

        loss = masked_loss_pallas(
            inp, tgt, epoch, mask_multiplier=mask_multiplier,
            max_epochs=max_epochs, **kwargs)
        loss = jax.block_until_ready(loss)

        # Reference on the same (possibly bf16-rounded) operands the kernel sees.
        ref_inp = inp.astype(compute_dtype).astype(jnp.float32)
        ref_tgt = tgt.astype(compute_dtype).astype(jnp.float32)
        ref = masked_loss_ref(ref_inp, ref_tgt, epoch,
                              mask_multiplier=mask_multiplier,
                              max_epochs=max_epochs)
        assert jnp.allclose(loss, ref, rtol=1e-4, atol=1e-6), (shape, loss, ref)

    key = jax.random.PRNGKey(0)
    k_a, k_b, k_c, k_d = jax.random.split(key, 4)

    # Module-default img_size=64, bf16 inputs, chip-aware default tile budget.
    run_case(k_a, (2, 4, 64, 64))
    # Small image (single pixel tile per image).
    run_case(k_b, (2, 4, 16, 16))
    # f32 compute path with a tiny tile budget to exercise multi-step
    # accumulation AND the 2-way core-split axis (rows=32 -> tr=8 -> 4 tiles).
    run_case(k_c, (2, 4, 64, 64), compute_dtype=jnp.float32,
             tile_target_bytes=16 * 1024, min_segment_bytes=4 * 1024)
    # Odd spatial size -> HW padded with 1.0 up to a multiple of 128 lanes.
    run_case(k_d, (1, 3, 10, 10))

    print("KERNEL_OK")
</pallas_src>

<mosaic_0001>
module attributes {stable_mosaic.version = 11 : i64} {
  func.func @_masked_loss_kernel(%arg0: i32, %arg1: i32, %arg2: i32, %arg3: memref<1x4x32x128xbf16, #tpu.memory_space<vmem>>, %arg4: memref<1x4x32x128xbf16, #tpu.memory_space<vmem>>, %arg5: memref<1x1x32x128xf32, #tpu.memory_space<vmem>>) attributes {dimension_semantics = [#tpu.dimension_semantics<parallel>, #tpu.dimension_semantics<parallel>, #tpu.dimension_semantics<arbitrary>], iteration_bounds = array<i64: 2, 1, 1>, scalar_prefetch = 0 : i64, scratch_operands = 0 : i64, tpu.core_type = #tpu.core_type<tc>, window_params = [{transform_indices = @transform_0, window_bounds = array<i64: 1, 4, 32, 128>}, {transform_indices = @transform_1, window_bounds = array<i64: 1, 4, 32, 128>}, {transform_indices = @transform_2, window_bounds = array<i64: 1, 1, 32, 128>}]} {
    %c0_i32 = arith.constant 0 : i32
    %0 = arith.cmpi eq, %arg2, %c0_i32 : i32
    %1 = arith.extui %0 : i1 to i32
    %c0_i32_0 = arith.constant 0 : i32
    %2 = arith.cmpi ne, %1, %c0_i32_0 : i32
    scf.if %2 {
      %cst_21 = arith.constant 0.000000e+00 : f32
      %24 = vector.broadcast %cst_21 : f32 to vector<1x1x32x128xf32>
      %c0_22 = arith.constant 0 : index
      %c0_23 = arith.constant 0 : index
      %c0_24 = arith.constant 0 : index
      %c0_25 = arith.constant 0 : index
      %25 = vector.load %arg5[%c0_22, %c0_23, %c0_24, %c0_25] : memref<1x1x32x128xf32, #tpu.memory_space<vmem>>, vector<1x1x32x128xf32>
      tpu.vector_store %arg5[%c0_22, %c0_23, %c0_24, %c0_25], %24 {strides = array<i32>} : memref<1x1x32x128xf32, #tpu.memory_space<vmem>>, vector<1x1x32x128xf32>,
    } else {
    }
    %c0 = arith.constant 0 : index
    %c0_1 = arith.constant 0 : index
    %c0_2 = arith.constant 0 : index
    %c0_3 = arith.constant 0 : index
    %3 = vector.load %arg3[%c0, %c0_1, %c0_2, %c0_3] : memref<1x4x32x128xbf16, #tpu.memory_space<vmem>>, vector<1x4x32x128xbf16>
    %4 = arith.extf %3 : vector<1x4x32x128xbf16> to vector<1x4x32x128xf32>
    %c0_4 = arith.constant 0 : index
    %c0_5 = arith.constant 0 : index
    %c0_6 = arith.constant 0 : index
    %c0_7 = arith.constant 0 : index
    %5 = vector.load %arg4[%c0_4, %c0_5, %c0_6, %c0_7] : memref<1x4x32x128xbf16, #tpu.memory_space<vmem>>, vector<1x4x32x128xbf16>
    %6 = arith.extf %5 : vector<1x4x32x128xbf16> to vector<1x4x32x128xf32>
    %cst = arith.constant dense<0.000000e+00> : vector<1x32x128xf32>
    %7 = vector.multi_reduction <add>, %6, %cst [1] : vector<1x4x32x128xf32> to vector<1x32x128xf32>
    %8 = vector.shape_cast %7 : vector<1x32x128xf32> to vector<1x1x32x128xf32>
    %cst_8 = arith.constant 4.000000e+00 : f32
    %9 = vector.broadcast %cst_8 : f32 to vector<1x1x32x128xf32>
    %10 = arith.divf %8, %9 : vector<1x1x32x128xf32>
    %cst_9 = arith.constant 1.000000e+00 : f32
    %11 = vector.broadcast %cst_9 : f32 to vector<1x1x32x128xf32>
    %12 = arith.cmpf oeq, %10, %11 : vector<1x1x32x128xf32>
    %cst_10 = arith.constant 0.000000e+00 : f32
    %cst_11 = arith.constant 1.000000e+00 : f32
    %13 = vector.broadcast %cst_10 : f32 to vector<1x1x32x128xf32>
    %14 = vector.broadcast %cst_11 : f32 to vector<1x1x32x128xf32>
    %15 = arith.select %12, %13, %14 : vector<1x1x32x128xi1>, vector<1x1x32x128xf32>
    %16 = arith.subf %4, %6 : vector<1x4x32x128xf32>
    %17 = arith.mulf %16, %16 : vector<1x4x32x128xf32>
    %cst_12 = arith.constant dense<0.000000e+00> : vector<1x32x128xf32>
    %18 = vector.multi_reduction <add>, %17, %cst_12 [1] : vector<1x4x32x128xf32> to vector<1x32x128xf32>
    %19 = vector.shape_cast %18 : vector<1x32x128xf32> to vector<1x1x32x128xf32>
    %c0_13 = arith.constant 0 : index
    %c0_14 = arith.constant 0 : index
    %c0_15 = arith.constant 0 : index
    %c0_16 = arith.constant 0 : index
    %20 = vector.load %arg5[%c0_13, %c0_14, %c0_15, %c0_16] : memref<1x1x32x128xf32, #tpu.memory_space<vmem>>, vector<1x1x32x128xf32>
    %21 = arith.mulf %19, %15 : vector<1x1x32x128xf32>
    %22 = arith.addf %20, %21 : vector<1x1x32x128xf32>
    %c0_17 = arith.constant 0 : index
    %c0_18 = arith.constant 0 : index
    %c0_19 = arith.constant 0 : index
    %c0_20 = arith.constant 0 : index
    %23 = vector.load %arg5[%c0_17, %c0_18, %c0_19, %c0_20] : memref<1x1x32x128xf32, #tpu.memory_space<vmem>>, vector<1x1x32x128xf32>
    tpu.vector_store %arg5[%c0_17, %c0_18, %c0_19, %c0_20], %22 {strides = array<i32>} : memref<1x1x32x128xf32, #tpu.memory_space<vmem>>, vector<1x1x32x128xf32>,
    return
  }
  func.func @transform_0(%arg0: i32, %arg1: i32, %arg2: i32) -> (i32, i32, i32, i32) {
    %c1_i32 = arith.constant 1 : i32
    %0 = arith.muli %arg1, %c1_i32 : i32
    %1 = arith.addi %0, %arg2 : i32
    %c0_i32 = arith.constant 0 : i32
    %c0_i32_0 = arith.constant 0 : i32
    %c0_i32_1 = arith.constant 0 : i32
    return %arg0, %c0_i32, %1, %c0_i32_0 : i32, i32, i32, i32
  }
  func.func @transform_1(%arg0: i32, %arg1: i32, %arg2: i32) -> (i32, i32, i32, i32) {
    %c1_i32 = arith.constant 1 : i32
    %0 = arith.muli %arg1, %c1_i32 : i32
    %1 = arith.addi %0, %arg2 : i32
    %c0_i32 = arith.constant 0 : i32
    %c0_i32_0 = arith.constant 0 : i32
    %c0_i32_1 = arith.constant 0 : i32
    return %arg0, %c0_i32, %1, %c0_i32_0 : i32, i32, i32, i32
  }
  func.func @transform_2(%arg0: i32, %arg1: i32, %arg2: i32) -> (i32, i32, i32, i32) {
    %c0_i32 = arith.constant 0 : i32
    %c0_i32_0 = arith.constant 0 : i32
    %c0_i32_1 = arith.constant 0 : i32
    return %arg0, %arg1, %c0_i32, %c0_i32_0 : i32, i32, i32, i32
  }
}

</mosaic_0001>

<llo_original>
// kernel: tpu_custom_call.1
$region0: #{tpu_custom_call.1}
  #allocation0 [shape = 'u32[]', space=smem, size = 0x4, offset = 0x4, fixed_abs, tag = 'smem constant byte address 0x4 - core index']
  #allocation1 [shape = 'u32[144,128]{1,0:T(1,128)}', space=vmem, size = 0x12000, scoped, tag = 'internal scratch']
  %s0 = inlined_call_operand.hbm [shape: bf16[2,4,32,128], index: 0, kind: input, shape index: {}]
  %s1 = inlined_call_operand.hbm [shape: bf16[2,4,32,128], index: 1, kind: input, shape index: {}]
  %s2 = inlined_call_operand.hbm [shape: f32[2,1,32,128], index: 2, kind: output, shape index: {}]
  %s3 = sld [smem:[#allocation0]]
  $region53: #{tpu_custom_call.1} parent=0
    _
  %s5 = ssub.s32 1, %s3
  %s6 = scalar_select 0, %s5, %s3
  $region1: #{tpu_custom_call.1} parent=0
    #allocation2 [shape = 'u8[65536]{0}', space=vmem, size = 0x10000, scoped, tag = 'input window, operand 0']
    #allocation3 [shape = 's32[2]{0}', space=sflag, size = 0x8, scoped, tag = 'scoped memory for tpu_custom_call.1']
    #allocation4 [shape = 's32[2]{0}', space=sflag, size = 0x8, scoped, tag = 'scoped memory for tpu_custom_call.1']
    #allocation5 [shape = 'u8[65536]{0}', space=vmem, size = 0x10000, scoped, tag = 'input window, operand 1']
    #allocation6 [shape = 's32[2]{0}', space=sflag, size = 0x8, scoped, tag = 'scoped memory for tpu_custom_call.1']
    #allocation7 [shape = 'u8[32768]{0}', space=vmem, size = 0x8000, scoped, tag = 'output window, operand 0']
    %7 = vsyncpa [#allocation3], 0
    %s8 = scalar_lea.sflag [#allocation3], 1
    %9 = vsyncpa %s8, 0
    %10 = vsyncpa [#allocation6], 0
    %s11 = scalar_lea.sflag [#allocation6], 1
    %12 = vsyncpa %s11, 0
    %13 = vsyncpa [#allocation4], 0
    %s14 = scalar_lea.sflag [#allocation4], 1
    %15 = vsyncpa %s14, 0
    loop: start=0, step=1, limit=4
    $region2: #{tpu_custom_call.1} parent=1 // loop_pre_header
      _
    $region3: #{tpu_custom_call.1} parent=1 // loop_header
      %s17 = sphi 0, %s21
      %p18 = scmp.ge.s32.totalorder %s17, 4
      %s24 = sphi 0, %s43
      %s25 = sphi 0, %s39
      %s26 = sphi 0, %s35
      %s27 = sphi 0, %s24
      %s28 = sphi 0, %s25
      %s29 = sphi 0, %s26
      %s30 = sphi 0, %s27
      %s31 = sphi 0, %s28
      %s32 = sphi 0, %s29
      %s50 = sphi 0, %s52
      %s53 = sphi 0, %s50
      %s54 = sphi 0, %s53
      %s70 = sphi 0, %s54
      %s80 = sphi 0, %s82
      %s83 = sphi 0, %s80
      %s84 = sphi 0, %s83
      %s100 = sphi 0, %s84
      %s108 = sphi 0, %s110
      %s111 = sphi 0, %s108
      %s112 = sphi 0, %s111
      %s128 = sphi 0, %s112
    $region4: #{tpu_custom_call.1} parent=1 // loop_header_branch
      %20 = sbr.rel (%p18) target = $region8
    $region5: #{tpu_custom_call.1} parent=1 // loop_body
      %s22 = ssub.s32 %s17, 1
      %s23 = ssub.s32 %s17, 2
      %s33 = sadd.s32 1, %s26
      %p34 = scmp.ge.s32.totalorder %s33, 1
      %s35 = scalar_select %p34, 0, %s33
      %s36 = sadd.s32 1, %s25
      %s37 = scalar_select %p34, %s36, %s25
      %p38 = scmp.ge.s32.totalorder %s37, 1
      %s39 = scalar_select %p38, 0, %s37
      %s40 = sadd.s32 1, %s24
      %s41 = scalar_select %p38, %s40, %s24
      %p42 = scmp.ge.s32.totalorder %s41, 2
      %s43 = scalar_select %p42, 0, %s41
      %s44 = sadd.s32 %s25, %s26
      %s45 = sadd.s32 %s39, %s35
      %s46 = ssub.s32 %s24, %s43
      %s47 = ssub.s32 %s44, %s45
      %s48 = sor.u32 %s46, %s47
      %p49 = scmp.eq.s32.totalorder %s48, 0
      %s51 = sadd.s32 %s50, 1
      %s52 = scalar_select %p49, %s50, %s51
      %p55 = pneg %p49
      %p56 = scmp.eq.s32.totalorder %s17, 1
      %p57 = por %p55, %p56
      %p58 = scmp.ne.s32.totalorder %s50, %s53
      %p59 = scmp.eq.s32.totalorder %s17, 0
      %p60 = por %p58, %p59
      %p61 = scmp.ne.s32.totalorder %s50, %s53
      %p62 = scmp.eq.s32.totalorder %s22, 1
      %p63 = por %p61, %p62
      %p64 = scmp.ne.s32.totalorder %s53, %s54
      %p65 = scmp.eq.s32.totalorder %s22, 0
      %p66 = por %p64, %p65
      %p67 = scmp.ne.s32.totalorder %s53, %s54
      %p68 = scmp.eq.s32.totalorder %s23, 1
      %p69 = por %p67, %p68
      %p71 = scmp.ne.s32.totalorder %s54, %s70
      %p72 = scmp.eq.s32.totalorder %s23, 0
      %p73 = por %p71, %p72
      %s74 = sadd.s32 %s25, %s26
      %s75 = sadd.s32 %s39, %s35
      %s76 = ssub.s32 %s24, %s43
      %s77 = ssub.s32 %s74, %s75
      %s78 = sor.u32 %s76, %s77
      %p79 = scmp.eq.s32.totalorder %s78, 0
      %s81 = sadd.s32 %s80, 1
      %s82 = scalar_select %p79, %s80, %s81
      %p85 = pneg %p79
      %p86 = scmp.eq.s32.totalorder %s17, 1
      %p87 = por %p85, %p86
      %p88 = scmp.ne.s32.totalorder %s80, %s83
      %p89 = scmp.eq.s32.totalorder %s17, 0
      %p90 = por %p88, %p89
      %p91 = scmp.ne.s32.totalorder %s80, %s83
      %p92 = scmp.eq.s32.totalorder %s22, 1
      %p93 = por %p91, %p92
      %p94 = scmp.ne.s32.totalorder %s83, %s84
      %p95 = scmp.eq.s32.totalorder %s22, 0
      %p96 = por %p94, %p95
      %p97 = scmp.ne.s32.totalorder %s83, %s84
      %p98 = scmp.eq.s32.totalorder %s23, 1
      %p99 = por %p97, %p98
      %p101 = scmp.ne.s32.totalorder %s84, %s100
      %p102 = scmp.eq.s32.totalorder %s23, 0
      %p103 = por %p101, %p102
      %s104 = ssub.s32 %s24, %s43
      %s105 = ssub.s32 %s25, %s39
      %s106 = sor.u32 %s104, %s105
      %p107 = scmp.eq.s32.totalorder %s106, 0
      %s109 = sadd.s32 %s108, 1
      %s110 = scalar_select %p107, %s108, %s109
      %p113 = pneg %p107
      %p114 = scmp.eq.s32.totalorder %s17, 1
      %p115 = por %p113, %p114
      %p116 = scmp.ne.s32.totalorder %s108, %s111
      %p117 = scmp.eq.s32.totalorder %s17, 0
      %p118 = por %p116, %p117
      %p119 = scmp.ne.s32.totalorder %s108, %s111
      %p120 = scmp.eq.s32.totalorder %s22, 1
      %p121 = por %p119, %p120
      %p122 = scmp.ne.s32.totalorder %s111, %s112
      %p123 = scmp.eq.s32.totalorder %s22, 0
      %p124 = por %p122, %p123
      %p125 = scmp.ne.s32.totalorder %s111, %s112
      %p126 = scmp.eq.s32.totalorder %s23, 1
      %p127 = por %p125, %p126
      %p129 = scmp.ne.s32.totalorder %s112, %s128
      %p130 = scmp.eq.s32.totalorder %s23, 0
      %p131 = por %p129, %p130
      %p132 = scmp.le.s32.totalorder 1, %s17
      %p133 = scmp.lt.s32.totalorder %s17, 3
      %p134 = pnand %p132, %p133
      %p135 = pneg %p134
      // Predicated region
      $region9: #{tpu_custom_call.1} parent=5 // pred_check
        _
      $region10: #{tpu_custom_call.1} parent=5 // pred_check_branch
        %137 = sbr.rel (%p134) target = $region12
      $region11: #{tpu_custom_call.1} parent=5 // pred_region
        %s138 = ssub.s32 %s17, 1
      $region12: #{tpu_custom_call.1} parent=5 // pred_fallthru
        _
      %p139 = scmp.lt.s32.totalorder %s17, 2
      // Predicated region
      $region13: #{tpu_custom_call.1} parent=5 // pred_check
        %p140 = pneg %p139
      $region14: #{tpu_custom_call.1} parent=5 // pred_check_branch
        %142 = sbr.rel (%p140) target = $region16
      $region15: #{tpu_custom_call.1} parent=5 // pred_region
        // Predicated region
        $region17: #{tpu_custom_call.1} parent=15 // pred_check
          %p143 = pneg %p60
        $region18: #{tpu_custom_call.1} parent=15 // pred_check_branch
          %145 = sbr.rel (%p143) target = $region20
        $region19: #{tpu_custom_call.1} parent=15 // pred_region
          %s146 = sand.u32 %s50, 1
          %s147 = scalar_lea.sflag [#allocation3], %s146
          %s148 = sand.u32 %s50, 1
          %s149 = smul.addr %s148, 64
          %s150 = scalar_lea.vmem [#allocation2], %s149
          %s151 = sadd.s32 %s25, %s26
          %s152 = smul.u32 4, %s151
          %s154 = ssub.s32 1024, 1024
          %155 = vsyncadd %s147, %s154
          %s156 = smul.addr %s24, 16
          %s157 = sadd.s32 %s152, %s156
          %s158 = smul.addr %s157, 64
          %s159 = scalar_lea.hbm %s0, %s158
          %s160 = sshll.u32 %s150, 4
          %s161 = int_to_ptr.vmem [resolvable:$true] %s160
          %166 = dma.hbm_to_vmem [thread:$0]  %s159, 1024, %s161, %s147, 64, 64, 4
        $region20: #{tpu_custom_call.1} parent=15 // pred_fallthru
          _
        // Predicated region
        $region21: #{tpu_custom_call.1} parent=15 // pred_check
          %p167 = pneg %p90
        $region22: #{tpu_custom_call.1} parent=15 // pred_check_branch
          %169 = sbr.rel (%p167) target = $region24
        $region23: #{tpu_custom_call.1} parent=15 // pred_region
          %s170 = sand.u32 %s80, 1
          %s171 = scalar_lea.sflag [#allocation6], %s170
          %s172 = sand.u32 %s80, 1
          %s173 = smul.addr %s172, 64
          %s174 = scalar_lea.vmem [#allocation5], %s173
          %s175 = sadd.s32 %s25, %s26
          %s176 = smul.u32 4, %s175
          %s178 = ssub.s32 1024, 1024
          %179 = vsyncadd %s171, %s178
          %s180 = smul.addr %s24, 16
          %s181 = sadd.s32 %s176, %s180
          %s182 = smul.addr %s181, 64
          %s183 = scalar_lea.hbm %s1, %s182
          %s184 = sshll.u32 %s174, 4
          %s185 = int_to_ptr.vmem [resolvable:$true] %s184
          %190 = dma.hbm_to_vmem [thread:$0]  %s183, 1024, %s185, %s171, 64, 64, 4
        $region24: #{tpu_custom_call.1} parent=15 // pred_fallthru
          _
      $region16: #{tpu_custom_call.1} parent=5 // pred_fallthru
        _
      %p191 = scmp.le.s32.totalorder 1, %s17
      %p192 = scmp.lt.s32.totalorder %s17, 3
      %p193 = pnand %p191, %p192
      %p194 = pneg %p193
      // Predicated region
      $region25: #{tpu_custom_call.1} parent=5 // pred_check
        _
      $region26: #{tpu_custom_call.1} parent=5 // pred_check_branch
        %196 = sbr.rel (%p193) target = $region28
      $region27: #{tpu_custom_call.1} parent=5 // pred_region
        %s197 = ssub.s32 %s17, 1
        %s198 = sand.u32 %s53, 1
        %s199 = scalar_lea.sflag [#allocation3], %s198
        %s200 = sand.u32 %s53, 1
        %s201 = smul.addr %s200, 64
        %s202 = scalar_lea.vmem [#allocation2], %s201
        // Predicated region
        $region29: #{tpu_custom_call.1} parent=27 // pred_check
          %p203 = pneg %p66
        $region30: #{tpu_custom_call.1} parent=27 // pred_check_branch
          %205 = sbr.rel (%p203) target = $region32
        $region31: #{tpu_custom_call.1} parent=27 // pred_region
          %206 = dma.done %s199, 1024
        $region32: #{tpu_custom_call.1} parent=27 // pred_fallthru
          _
        %s207 = sand.u32 %s83, 1
        %s208 = scalar_lea.sflag [#allocation6], %s207
        %s209 = sand.u32 %s83, 1
        %s210 = smul.addr %s209, 64
        %s211 = scalar_lea.vmem [#allocation5], %s210
        // Predicated region
        $region33: #{tpu_custom_call.1} parent=27 // pred_check
          %p212 = pneg %p96
        $region34: #{tpu_custom_call.1} parent=27 // pred_check_branch
          %214 = sbr.rel (%p212) target = $region36
        $region35: #{tpu_custom_call.1} parent=27 // pred_region
          %215 = dma.done %s208, 1024
        $region36: #{tpu_custom_call.1} parent=27 // pred_fallthru
          _
        %s216 = sand.u32 %s53, 1
        %s217 = scalar_lea.sflag [#allocation3], %s216
        %s218 = sand.u32 %s53, 1
        %s219 = smul.addr %s218, 64
        %s220 = scalar_lea.vmem [#allocation2], %s219
        %p221 = pneg %p66
        %p222 = pneg %p63
        %s223 = sand.u32 %s83, 1
        %s224 = scalar_lea.sflag [#allocation6], %s223
        %s225 = sand.u32 %s83, 1
        %s226 = smul.addr %s225, 64
        %s227 = scalar_lea.vmem [#allocation5], %s226
        %p228 = pneg %p96
        %p229 = pneg %p93
        %p230 = pneg %p124
        %p231 = pneg %p121
        %s232 = sand.u32 %s111, 1
        %s233 = scalar_lea.sflag [#allocation4], %s232
        %s234 = sand.u32 %s111, 1
        %s235 = smul.addr %s234, 32
        %s236 = scalar_lea.vmem [#allocation7], %s235
        %s237 = sadd.s32 %s28, %s29
        %s238 = smul.u32 4, %s237
        %s239 = sadd.s32 %s28, %s29
        %s240 = smul.u32 4, %s239
        %p241 = scmp.eq.s32.totalorder %s29, 0
        // Predicated region
        $region37: #{tpu_custom_call.1} parent=27 // pred_check
          %p242 = pneg %p241
        $region38: #{tpu_custom_call.1} parent=27 // pred_check_branch
          %244 = sbr.rel (%p242) target = $region40
        $region39: #{tpu_custom_call.1} parent=27 // pred_region
          %245 = vst [vmem:[%s236] sm:$0xff] 0.0
          %246 = vst [vmem:[%s236 + $0x8] sm:$0xff] 0.0
          %247 = vst [vmem:[%s236 + $0x10] sm:$0xff] 0.0
          %248 = vst [vmem:[%s236 + $0x18] sm:$0xff] 0.0
        $region40: #{tpu_custom_call.1} parent=27 // pred_fallthru
          _
        %v249 = vld [vmem:[%s202] sm:$0xf]
        %v250 = vld [vmem:[%s202 + $0x4] sm:$0xf]
        %v251 = vld [vmem:[%s202 + $0x8] sm:$0xf]
        %v252 = vld [vmem:[%s202 + $0xc] sm:$0xf]
        %v253 = vld [vmem:[%s202 + $0x10] sm:$0xf]
        %v254 = vld [vmem:[%s202 + $0x14] sm:$0xf]
        %v255 = vld [vmem:[%s202 + $0x18] sm:$0xf]
        %v256 = vld [vmem:[%s202 + $0x1c] sm:$0xf]
        %v257 = vld [vmem:[%s202 + $0x20] sm:$0xf]
        %v258 = vld [vmem:[%s202 + $0x24] sm:$0xf]
        %v259 = vld [vmem:[%s202 + $0x28] sm:$0xf]
        %v260 = vld [vmem:[%s202 + $0x2c] sm:$0xf]
        %v261 = vld [vmem:[%s202 + $0x30] sm:$0xf]
        %v262 = vld [vmem:[%s202 + $0x34] sm:$0xf]
        %v263 = vld [vmem:[%s202 + $0x38] sm:$0xf]
        %v264 = vld [vmem:[%s202 + $0x3c] sm:$0xf]
        %v265 = vunpack.c.l.bf16 %v249
        %v266 = vunpack.c.l.bf16 %v250
        %v267 = vunpack.c.l.bf16 %v251
        %v268 = vunpack.c.l.bf16 %v252
        %v269 = vunpack.c.l.bf16 %v253
        %v270 = vunpack.c.l.bf16 %v254
        %v271 = vunpack.c.l.bf16 %v255
        %v272 = vunpack.c.l.bf16 %v256
        %v273 = vunpack.c.l.bf16 %v257
        %v274 = vunpack.c.l.bf16 %v258
        %v275 = vunpack.c.l.bf16 %v259
        %v276 = vunpack.c.l.bf16 %v260
        %v277 = vunpack.c.l.bf16 %v261
        %v278 = vunpack.c.l.bf16 %v262
        %v279 = vunpack.c.l.bf16 %v263
        %v280 = vunpack.c.l.bf16 %v264
        %v281 = vld [vmem:[%s211] sm:$0xf]
        %v282 = vld [vmem:[%s211 + $0x4] sm:$0xf]
        %v283 = vld [vmem:[%s211 + $0x8] sm:$0xf]
        %v284 = vld [vmem:[%s211 + $0xc] sm:$0xf]
        %v285 = vld [vmem:[%s211 + $0x10] sm:$0xf]
        %v286 = vld [vmem:[%s211 + $0x14] sm:$0xf]
        %v287 = vld [vmem:[%s211 + $0x18] sm:$0xf]
        %v288 = vld [vmem:[%s211 + $0x1c] sm:$0xf]
        %v289 = vld [vmem:[%s211 + $0x20] sm:$0xf]
        %v290 = vld [vmem:[%s211 + $0x24] sm:$0xf]
        %v291 = vld [vmem:[%s211 + $0x28] sm:$0xf]
        %v292 = vld [vmem:[%s211 + $0x2c] sm:$0xf]
        %v293 = vld [vmem:[%s211 + $0x30] sm:$0xf]
        %v294 = vld [vmem:[%s211 + $0x34] sm:$0xf]
        %v295 = vld [vmem:[%s211 + $0x38] sm:$0xf]
        %v296 = vld [vmem:[%s211 + $0x3c] sm:$0xf]
        %v297 = vunpack.c.l.bf16 %v281
        %v298 = vunpack.c.l.bf16 %v282
        %v299 = vunpack.c.l.bf16 %v283
        %v300 = vunpack.c.l.bf16 %v284
        %v301 = vunpack.c.l.bf16 %v285
        %v302 = vunpack.c.l.bf16 %v286
        %v303 = vunpack.c.l.bf16 %v287
        %v304 = vunpack.c.l.bf16 %v288
        %v305 = vunpack.c.l.bf16 %v289
        %v306 = vunpack.c.l.bf16 %v290
        %v307 = vunpack.c.l.bf16 %v291
        %v308 = vunpack.c.l.bf16 %v292
        %v309 = vunpack.c.l.bf16 %v293
        %v310 = vunpack.c.l.bf16 %v294
        %v311 = vunpack.c.l.bf16 %v295
        %v312 = vunpack.c.l.bf16 %v296
        %v313 = vadd.f32 %v297, %v301
        %v314 = vadd.f32 %v313, %v305
        %v315 = vadd.f32 %v314, %v309
        %v316 = vadd.f32 %v298, %v302
        %v317 = vadd.f32 %v316, %v306
        %v318 = vadd.f32 %v317, %v310
        %v319 = vadd.f32 %v299, %v303
        %v320 = vadd.f32 %v319, %v307
        %v321 = vadd.f32 %v320, %v311
        %v322 = vadd.f32 %v300, %v304
        %v323 = vadd.f32 %v322, %v308
        %v324 = vadd.f32 %v323, %v312
        %v325 = vrcp.pop 4.0
        %v326 = vmul.f32 %v315, %v325
        %v327 = vmul.f32 %v318, %v325
        %v328 = vmul.f32 %v321, %v325
        %v329 = vmul.f32 %v324, %v325
        %vm330 = vcmp.eq.f32.partialorder %v326, 1.0
        %vm331 = vcmp.eq.f32.partialorder %v327, 1.0
        %vm332 = vcmp.eq.f32.partialorder %v328, 1.0
        %vm333 = vcmp.eq.f32.partialorder %v329, 1.0
        %v334 = vsel %vm330, 0.0, 1.0
        %v335 = vsel %vm331, 0.0, 1.0
        %v336 = vsel %vm332, 0.0, 1.0
        %v337 = vsel %vm333, 0.0, 1.0
        %v338 = vsub.f32 %v265, %v297
        %v339 = vsub.f32 %v266, %v298
        %v340 = vsub.f32 %v267, %v299
        %v341 = vsub.f32 %v268, %v300
        %v342 = vsub.f32 %v269, %v301
        %v343 = vsub.f32 %v270, %v302
        %v344 = vsub.f32 %v271, %v303
        %v345 = vsub.f32 %v272, %v304
        %v346 = vsub.f32 %v273, %v305
        %v347 = vsub.f32 %v274, %v306
        %v348 = vsub.f32 %v275, %v307
        %v349 = vsub.f32 %v276, %v308
        %v350 = vsub.f32 %v277, %v309
        %v351 = vsub.f32 %v278, %v310
        %v352 = vsub.f32 %v279, %v311
        %v353 = vsub.f32 %v280, %v312
        %v354 = vmul.f32 %v338, %v338
        %v355 = vmul.f32 %v339, %v339
        %v356 = vmul.f32 %v340, %v340
        %v357 = vmul.f32 %v341, %v341
        %v358 = vmul.f32 %v342, %v342
        %v359 = vmul.f32 %v343, %v343
        %v360 = vmul.f32 %v344, %v344
        %v361 = vmul.f32 %v345, %v345
        %v362 = vmul.f32 %v346, %v346
        %v363 = vmul.f32 %v347, %v347
        %v364 = vmul.f32 %v348, %v348
        %v365 = vmul.f32 %v349, %v349
        %v366 = vmul.f32 %v350, %v350
        %v367 = vmul.f32 %v351, %v351
        %v368 = vmul.f32 %v352, %v352
        %v369 = vmul.f32 %v353, %v353
        %v370 = vadd.f32 %v354, %v358
        %v371 = vadd.f32 %v370, %v362
        %v372 = vadd.f32 %v371, %v366
        %v373 = vadd.f32 %v355, %v359
        %v374 = vadd.f32 %v373, %v363
        %v375 = vadd.f32 %v374, %v367
        %v376 = vadd.f32 %v356, %v360
        %v377 = vadd.f32 %v376, %v364
        %v378 = vadd.f32 %v377, %v368
        %v379 = vadd.f32 %v357, %v361
        %v380 = vadd.f32 %v379, %v365
        %v381 = vadd.f32 %v380, %v369
        %v382 = vld [vmem:[%s236] sm:$0xff]
        %v383 = vld [vmem:[%s236 + $0x8] sm:$0xff]
        %v384 = vld [vmem:[%s236 + $0x10] sm:$0xff]
        %v385 = vld [vmem:[%s236 + $0x18] sm:$0xff]
        %v386 = vmul.f32 %v372, %v334
        %v387 = vmul.f32 %v375, %v335
        %v388 = vmul.f32 %v378, %v336
        %v389 = vmul.f32 %v381, %v337
        %v390 = vadd.f32 %v382, %v386
        %v391 = vadd.f32 %v383, %v387
        %v392 = vadd.f32 %v384, %v388
        %v393 = vadd.f32 %v385, %v389
        %394 = vst [vmem:[%s236] sm:$0xff] %v390
        %395 = vst [vmem:[%s236 + $0x8] sm:$0xff] %v391
        %396 = vst [vmem:[%s236 + $0x10] sm:$0xff] %v392
        %397 = vst [vmem:[%s236 + $0x18] sm:$0xff] %v393
        %s398 = sand.u32 %s111, 1
        %s399 = scalar_lea.sflag [#allocation4], %s398
        %s400 = sand.u32 %s111, 1
        %s401 = smul.addr %s400, 32
        %s402 = scalar_lea.vmem [#allocation7], %s401
        // Predicated region
        $region41: #{tpu_custom_call.1} parent=27 // pred_check
          %p403 = pneg %p121
        $region42: #{tpu_custom_call.1} parent=27 // pred_check_branch
          %405 = sbr.rel (%p403) target = $region44
        $region43: #{tpu_custom_call.1} parent=27 // pred_region
          %s407 = ssub.s32 512, 512
          %408 = vsyncadd %s399, %s407
          %s409 = smul.addr %s28, 4
          %s410 = smul.addr %s27, 4
          %s411 = sadd.s32 %s409, %s410
          %s412 = smul.addr %s411, 128
          %s413 = scalar_lea.hbm %s2, %s412
          %s414 = sshll.u32 %s402, 4
          %s415 = int_to_ptr.vmem [resolvable:$true] %s414
          %420 = dma.vmem_to_hbm [thread:$0]  %s415, 512, %s413, %s399, 128, 128, 8
        $region44: #{tpu_custom_call.1} parent=27 // pred_fallthru
          _
      $region28: #{tpu_custom_call.1} parent=5 // pred_fallthru
        _
      %p421 = scmp.le.s32.totalorder 2, %s17
      // Predicated region
      $region45: #{tpu_custom_call.1} parent=5 // pred_check
        %p422 = pneg %p421
      $region46: #{tpu_custom_call.1} parent=5 // pred_check_branch
        %424 = sbr.rel (%p422) target = $region48
      $region47: #{tpu_custom_call.1} parent=5 // pred_region
        %s425 = ssub.s32 %s17, 2
        // Predicated region
        $region49: #{tpu_custom_call.1} parent=47 // pred_check
          %p426 = pneg %p127
        $region50: #{tpu_custom_call.1} parent=47 // pred_check_branch
          %428 = sbr.rel (%p426) target = $region52
        $region51: #{tpu_custom_call.1} parent=47 // pred_region
          %s429 = sand.u32 %s112, 1
          %s430 = scalar_lea.sflag [#allocation4], %s429
          %s431 = sand.u32 %s112, 1
          %s432 = smul.addr %s431, 32
          %s433 = scalar_lea.vmem [#allocation7], %s432
          %434 = dma.done %s430, 512
        $region52: #{tpu_custom_call.1} parent=47 // pred_fallthru
          _
      $region48: #{tpu_custom_call.1} parent=5 // pred_fallthru
        _
    $region6: #{tpu_custom_call.1} parent=1 // loop_footer
      %s21 = sadd.s32 1, %s17
    $region7: #{tpu_custom_call.1} parent=1 // loop_footer_branch
      %16 = sbr.rel target = $region3
    $region8: #{tpu_custom_call.1} parent=1 // loop_exit
      _
    %435 = vsyncpa [#allocation3], 1
    %s436 = scalar_lea.sflag [#allocation3], 1
    %437 = vsyncpa %s436, 1
    %438 = vsyncpa [#allocation6], 1
    %s439 = scalar_lea.sflag [#allocation6], 1
    %440 = vsyncpa %s439, 1
    %441 = vsyncpa [#allocation4], 1
    %s442 = scalar_lea.sflag [#allocation4], 1
    %443 = vsyncpa %s442, 1

</llo_original>
